<compile_context>
chip_gen: v7x
topology: tpu7x:2x2x1
jax: 0.10.0
libtpu: 0.0.40
codegen_flags: <defaults>
</compile_context>

<pallas_src>
import functools

import jax
import jax.numpy as jnp
from jax.experimental import pallas as pl
from jax.experimental.pallas import tpu as pltpu


def _yolo_kernel(training, inv_w, grid_ref, ascale_ref, x_ref, o_ref):
    """grid_ref:    (2, HWt)      f32  row 0 = xv, row 1 = yv (flattened H*W)
       ascale_ref:  (A, 2, 1)     f32  anchors / 416
       x_ref/o_ref: (1, A, C, HWt) f32 tile for the current (batch, hw-tile)."""
    x = x_ref[0]                                       # (A, C, HWt)

    if training:
        # Rows 0:4 pass through untouched, rows 4: sigmoid; one full-tile store.
        o_ref[0] = jnp.concatenate(
            [x[:, 0:4, :], jax.nn.sigmoid(x[:, 4:, :])], axis=1)
    else:
        sig = jax.nn.sigmoid(x)                        # single EUP pass, whole tile
        # xy rows: (sigmoid + grid) * (1/w)  -- multiply by reciprocal constant.
        xy = (sig[:, 0:2, :] + grid_ref[...][None]) * inv_w
        # wh rows: exp only on the 2 rows that need it, times anchors/416.
        wh = jnp.exp(x[:, 2:4, :]) * ascale_ref[...]
        # Assemble the full (A, C, HWt) result and issue ONE lane-dense store.
        o_ref[0] = jnp.concatenate([xy, wh, sig[:, 4:, :]], axis=1)


def _pick_hw_tile(hw_pad, a, c, budget_bytes=4 * 1024 * 1024):
    """Largest multiple-of-128 divisor of hw_pad whose (A, C, tile) block fits."""
    k = hw_pad // 128
    best = 1
    for t in range(1, k + 1):
        if k % t == 0 and a * c * (128 * t) * 4 <= budget_bytes:
            best = t
    return 128 * best


def yolo_layer_forward(x, anchors, training, *, channel_major=False):
    """x: (B, A*(classesNum+5), H, W) float32 (NCHW).  anchors: (A, 2).
       Returns (B, A, H, W, classesNum+5) f32, or (B, A, C, H*W) if
       channel_major=True (skips the layout-change pass)."""
    B, Cin, H, W = x.shape
    A = anchors.shape[0]
    C = Cin // A
    HW = H * W
    HWp = ((HW + 127) // 128) * 128                    # lane-dense padding

    x_r = x.astype(jnp.float32).reshape(B, A, C, HW)
    if HWp != HW:
        x_r = jnp.pad(x_r, ((0, 0), (0, 0), (0, 0), (0, HWp - HW)))

    # meshgrid (xv, yv), flattened row-major over (H, W); row 0 = xv, row 1 = yv.
    yv, xv = jnp.meshgrid(jnp.arange(H), jnp.arange(W), indexing="ij")
    grid_xy = jnp.stack([xv.reshape(-1), yv.reshape(-1)], 0).astype(jnp.float32)
    if HWp != HW:
        grid_xy = jnp.pad(grid_xy, ((0, 0), (0, HWp - HW)))

    # anchors / 416 as a small (A, 2, 1) VMEM input (broadcast over lanes).
    ascale = (anchors.astype(jnp.float32) / 416.0).reshape(A, 2, 1)

    hw_tile = _pick_hw_tile(HWp, A, C)
    n_hw = HWp // hw_tile
    block_bytes = A * C * hw_tile * 4

    kernel = functools.partial(_yolo_kernel, bool(training), float(1.0 / W))

    # Advisory cost estimate so XLA schedules this small custom call sensibly.
    n_elem = B * A * C * HWp
    transcendentals = (B * A * (C - 4) * HWp) if training \
        else (n_elem + 2 * B * A * HWp)
    cost = pl.CostEstimate(
        flops=4 * n_elem,
        transcendentals=int(transcendentals),
        bytes_accessed=int(2 * n_elem * 4 + 2 * HWp * 4 + A * 2 * 4),
    )

    out = pl.pallas_call(
        kernel,
        out_shape=jax.ShapeDtypeStruct((B, A, C, HWp), jnp.float32),
        grid_spec=pltpu.PrefetchScalarGridSpec(
            num_scalar_prefetch=0,
            grid=(B, n_hw),
            in_specs=[
                pl.BlockSpec((2, hw_tile), lambda b, s: (0, s)),
                pl.BlockSpec((A, 2, 1), lambda b, s: (0, 0, 0)),
                pl.BlockSpec((1, A, C, hw_tile), lambda b, s: (b, 0, 0, s)),
            ],
            out_specs=pl.BlockSpec((1, A, C, hw_tile), lambda b, s: (b, 0, 0, s)),
        ),
        compiler_params=pltpu.CompilerParams(
            dimension_semantics=("parallel", "parallel"),
            # explicit scoped-VMEM limit so big feature maps don't hit the
            # 16 MiB v5e default once blocks grow (harmless on v6e/v7x).
            vmem_limit_bytes=int(min(48 * 2**20,
                                     max(16 * 2**20, 6 * block_bytes + (1 << 20)))),
        ),
        cost_estimate=cost,
    )(grid_xy, ascale, x_r)

    out = out[..., :HW] if HWp != HW else out          # (B, A, C, HW)
    if channel_major:
        return out
    # Torch-compatible layout: (B, A, C, HW) -> (B, A, H, W, C).
    return out.reshape(B, A, C, H, W).transpose(0, 1, 3, 4, 2)


def yolo_layer_reference(x, anchors, training):
    """Pure-JAX reference mirroring the PyTorch forward exactly."""
    B, Cin, H, W = x.shape
    A = anchors.shape[0]
    C = Cin // A
    xr = x.astype(jnp.float32).reshape(B, A, C, H, W).transpose(0, 1, 3, 4, 2)
    out = xr.at[..., 4:].set(jax.nn.sigmoid(xr[..., 4:]))
    if training:
        return out
    yv, xv = jnp.meshgrid(jnp.arange(H), jnp.arange(W), indexing="ij")
    grid = jnp.stack((xv, yv), 2).astype(jnp.float32).reshape(1, 1, H, W, 2)
    anchor_grid = anchors.astype(jnp.float32).reshape(1, A, 1, 1, 2)
    out = out.at[..., 0:2].set((jax.nn.sigmoid(out[..., 0:2]) + grid) / W)
    out = out.at[..., 2:4].set(jnp.exp(out[..., 2:4]) * anchor_grid / 416.0)
    return out


if __name__ == "__main__":
    # Module config matching __init__ parsing of the strings:
    #   anchors="10,14,23,27,37,58,81,82,135,169,344,319", anchorsMask="0,1,2",
    #   classesNum=3 (416 is hardcoded in the forward).
    anchors_all = [10, 14, 23, 27, 37, 58, 81, 82, 135, 169, 344, 319]
    mask = [0, 1, 2]
    anchors = jnp.array(
        [[anchors_all[2 * m], anchors_all[2 * m + 1]] for m in mask],
        dtype=jnp.int32)                               # (A=3, 2)
    classes_num = 3
    A = anchors.shape[0]
    C = classes_num + 5                                # 8 channels per anchor

    B, H, W = 2, 16, 16
    key = jax.random.PRNGKey(0)
    x = 0.5 * jax.random.normal(key, (B, A * C, H, W), dtype=jnp.float32)

    ok = True
    for training in (True, False):
        got = jax.block_until_ready(yolo_layer_forward(x, anchors, training))
        want = yolo_layer_reference(x, anchors, training)
        if got.shape != (B, A, H, W, C):
            ok = False
        if not jnp.allclose(got, want, rtol=1e-5, atol=1e-5):
            ok = False

    # Channel-major fast path (no post-kernel layout change) against the same ref.
    got_cm = jax.block_until_ready(
        yolo_layer_forward(x, anchors, False, channel_major=True))
    want_cm = yolo_layer_reference(x, anchors, False).transpose(
        0, 1, 4, 2, 3).reshape(B, A, C, H * W)
    if not jnp.allclose(got_cm, want_cm, rtol=1e-5, atol=1e-5):
        ok = False

    print("KERNEL_OK" if ok else "KERNEL_MISMATCH")
</pallas_src>

<mosaic_0001>
module attributes {stable_mosaic.version = 11 : i64} {
  func.func @_yolo_kernel(%arg0: i32, %arg1: i32, %arg2: memref<2x256xf32, #tpu.memory_space<vmem>>, %arg3: memref<3x2x1xf32, #tpu.memory_space<vmem>>, %arg4: memref<1x3x8x256xf32, #tpu.memory_space<vmem>>, %arg5: memref<1x3x8x256xf32, #tpu.memory_space<vmem>>) attributes {dimension_semantics = [#tpu.dimension_semantics<parallel>, #tpu.dimension_semantics<parallel>], iteration_bounds = array<i64: 2, 1>, scalar_prefetch = 0 : i64, scratch_operands = 0 : i64, tpu.core_type = #tpu.core_type<tc>, window_params = [{transform_indices = @transform_0, window_bounds = array<i64: 2, 256>}, {pipeline_mode = #tpu.pipeline_mode<synchronous>, transform_indices = @transform_1, window_bounds = array<i64: 3, 2, 1>}, {transform_indices = @transform_2, window_bounds = array<i64: 1, 3, 8, 256>}, {transform_indices = @transform_3, window_bounds = array<i64: 1, 3, 8, 256>}]} {
    %c0 = arith.constant 0 : index
    %c0_0 = arith.constant 0 : index
    %c0_1 = arith.constant 0 : index
    %c0_2 = arith.constant 0 : index
    %0 = vector.load %arg4[%c0, %c0_0, %c0_1, %c0_2] : memref<1x3x8x256xf32, #tpu.memory_space<vmem>>, vector<1x3x8x256xf32>
    %1 = vector.shape_cast %0 : vector<1x3x8x256xf32> to vector<3x8x256xf32>
    %2 = vector.extract_strided_slice %1 {offsets = [0, 0, 0], sizes = [3, 4, 256], strides = [1, 1, 1]} : vector<3x8x256xf32> to vector<3x4x256xf32>
    %3 = vector.extract_strided_slice %1 {offsets = [0, 4, 0], sizes = [3, 4, 256], strides = [1, 1, 1]} : vector<3x8x256xf32> to vector<3x4x256xf32>
    %4 = arith.negf %3 : vector<3x4x256xf32>
    %5 = math.exp %4 : vector<3x4x256xf32>
    %cst = arith.constant 1.000000e+00 : f32
    %6 = vector.broadcast %cst : f32 to vector<3x4x256xf32>
    %7 = arith.addf %6, %5 : vector<3x4x256xf32>
    %8 = arith.divf %6, %7 : vector<3x4x256xf32>
    %9 = tpu.concatenate %2, %8 in 1 : vector<3x4x256xf32>, vector<3x4x256xf32> -> vector<3x8x256xf32>
    %c0_3 = arith.constant 0 : index
    %c0_4 = arith.constant 0 : index
    %c0_5 = arith.constant 0 : index
    %c0_6 = arith.constant 0 : index
    %10 = vector.load %arg5[%c0_3, %c0_4, %c0_5, %c0_6] : memref<1x3x8x256xf32, #tpu.memory_space<vmem>>, vector<1x3x8x256xf32>
    %11 = vector.shape_cast %10 : vector<1x3x8x256xf32> to vector<3x8x256xf32>
    %12 = vector.shape_cast %9 : vector<3x8x256xf32> to vector<1x3x8x256xf32>
    tpu.vector_store %arg5[%c0_3, %c0_4, %c0_5, %c0_6], %12 {strides = array<i32>} : memref<1x3x8x256xf32, #tpu.memory_space<vmem>>, vector<1x3x8x256xf32>,
    return
  }
  func.func @transform_0(%arg0: i32, %arg1: i32) -> (i32, i32) {
    %c0_i32 = arith.constant 0 : i32
    %c0_i32_0 = arith.constant 0 : i32
    return %c0_i32, %arg1 : i32, i32
  }
  func.func @transform_1(%arg0: i32, %arg1: i32) -> (i32, i32, i32) {
    %c0_i32 = arith.constant 0 : i32
    %c0_i32_0 = arith.constant 0 : i32
    %c0_i32_1 = arith.constant 0 : i32
    %c0_i32_2 = arith.constant 0 : i32
    return %c0_i32, %c0_i32_0, %c0_i32_1 : i32, i32, i32
  }
  func.func @transform_2(%arg0: i32, %arg1: i32) -> (i32, i32, i32, i32) {
    %c0_i32 = arith.constant 0 : i32
    %c0_i32_0 = arith.constant 0 : i32
    %c0_i32_1 = arith.constant 0 : i32
    return %arg0, %c0_i32, %c0_i32_0, %arg1 : i32, i32, i32, i32
  }
  func.func @transform_3(%arg0: i32, %arg1: i32) -> (i32, i32, i32, i32) {
    %c0_i32 = arith.constant 0 : i32
    %c0_i32_0 = arith.constant 0 : i32
    %c0_i32_1 = arith.constant 0 : i32
    return %arg0, %c0_i32, %c0_i32_0, %arg1 : i32, i32, i32, i32
  }
}

</mosaic_0001>

<llo_original>
// kernel: tpu_custom_call.1
$region0: #{tpu_custom_call.1}
  #allocation0 [shape = 'u32[]', space=smem, size = 0x4, offset = 0x4, fixed_abs, tag = 'smem constant byte address 0x4 - core index']
  #allocation1 [shape = 'u32[144,128]{1,0:T(1,128)}', space=vmem, size = 0x12000, scoped, tag = 'internal scratch']
  %s0 = inlined_call_operand.vmem [shape: f32[2,256], index: 0, kind: input, shape index: {}]
  %s1 = inlined_call_operand.vmem [shape: f32[3,2,1], index: 1, kind: input, shape index: {}]
  %s2 = inlined_call_operand.hbm [shape: f32[2,3,8,256], index: 2, kind: input, shape index: {}]
  %s3 = inlined_call_operand.hbm [shape: f32[2,3,8,256], index: 3, kind: output, shape index: {}]
  %s4 = sld [smem:[#allocation0]]
  $region49: #{tpu_custom_call.1} parent=0
    _
  %s6 = ssub.s32 1, %s4
  %s7 = scalar_select 0, %s6, %s4
  $region1: #{tpu_custom_call.1} parent=0
    #allocation2 [shape = 'u8[49152]{0}', space=vmem, size = 0xc000, scoped, tag = 'input window, operand 2']
    #allocation3 [shape = 's32[2]{0}', space=sflag, size = 0x8, scoped, tag = 'scoped memory for tpu_custom_call.1']
    #allocation4 [shape = 's32[2]{0}', space=sflag, size = 0x8, scoped, tag = 'scoped memory for tpu_custom_call.1']
    #allocation5 [shape = 'u8[49152]{0}', space=vmem, size = 0xc000, scoped, tag = 'output window, operand 0']
    %8 = vsyncpa [#allocation3], 0
    %s9 = scalar_lea.sflag [#allocation3], 1
    %10 = vsyncpa %s9, 0
    %11 = vsyncpa [#allocation4], 0
    %s12 = scalar_lea.sflag [#allocation4], 1
    %13 = vsyncpa %s12, 0
    loop: start=0, step=1, limit=4
    $region2: #{tpu_custom_call.1} parent=1 // loop_pre_header
      _
    $region3: #{tpu_custom_call.1} parent=1 // loop_header
      %s15 = sphi 0, %s19
      %p16 = scmp.ge.s32.totalorder %s15, 4
      %s22 = sphi 0, %s34
      %s23 = sphi 0, %s30
      %s24 = sphi 0, %s22
      %s25 = sphi 0, %s23
      %s26 = sphi 0, %s24
      %s27 = sphi 0, %s25
      %s37 = sphi 0, %s39
      %s40 = sphi 0, %s37
      %s41 = sphi 0, %s40
      %s57 = sphi 0, %s41
      %s61 = sphi 0, %s61
      %s63 = sphi 0, %s61
      %s64 = sphi 0, %s63
      %s78 = sphi 0, %s64
      %s86 = sphi 0, %s88
      %s89 = sphi 0, %s86
      %s90 = sphi 0, %s89
      %s106 = sphi 0, %s90
      %s114 = sphi 0, %s116
      %s117 = sphi 0, %s114
      %s118 = sphi 0, %s117
      %s134 = sphi 0, %s118
    $region4: #{tpu_custom_call.1} parent=1 // loop_header_branch
      %18 = sbr.rel (%p16) target = $region8
    $region5: #{tpu_custom_call.1} parent=1 // loop_body
      %s20 = ssub.s32 %s15, 1
      %s21 = ssub.s32 %s15, 2
      %s28 = sadd.s32 1, %s23
      %p29 = scmp.ge.s32.totalorder %s28, 1
      %s30 = scalar_select %p29, 0, %s28
      %s31 = sadd.s32 1, %s22
      %s32 = scalar_select %p29, %s31, %s22
      %p33 = scmp.ge.s32.totalorder %s32, 2
      %s34 = scalar_select %p33, 0, %s32
      %s35 = ssub.s32 %s23, %s30
      %p36 = scmp.eq.s32.totalorder %s35, 0
      %s38 = sadd.s32 %s37, 1
      %s39 = scalar_select %p36, %s37, %s38
      %p42 = pneg %p36
      %p43 = scmp.eq.s32.totalorder %s15, 1
      %p44 = por %p42, %p43
      %p45 = scmp.ne.s32.totalorder %s37, %s40
      %p46 = scmp.eq.s32.totalorder %s15, 0
      %p47 = por %p45, %p46
      %p48 = scmp.ne.s32.totalorder %s37, %s40
      %p49 = scmp.eq.s32.totalorder %s20, 1
      %p50 = por %p48, %p49
      %p51 = scmp.ne.s32.totalorder %s40, %s41
      %p52 = scmp.eq.s32.totalorder %s20, 0
      %p53 = por %p51, %p52
      %p54 = scmp.ne.s32.totalorder %s40, %s41
      %p55 = scmp.eq.s32.totalorder %s21, 1
      %p56 = por %p54, %p55
      %p58 = scmp.ne.s32.totalorder %s41, %s57
      %p59 = scmp.eq.s32.totalorder %s21, 0
      %p60 = por %p58, %p59
      %s62 = sadd.s32 %s61, 1
      %p65 = scmp.eq.s32.totalorder %s15, 1
      %p66 = scmp.ne.s32.totalorder %s61, %s63
      %p67 = scmp.eq.s32.totalorder %s15, 0
      %p68 = por %p66, %p67
      %p69 = scmp.ne.s32.totalorder %s61, %s63
      %p70 = scmp.eq.s32.totalorder %s20, 1
      %p71 = por %p69, %p70
      %p72 = scmp.ne.s32.totalorder %s63, %s64
      %p73 = scmp.eq.s32.totalorder %s20, 0
      %p74 = por %p72, %p73
      %p75 = scmp.ne.s32.totalorder %s63, %s64
      %p76 = scmp.eq.s32.totalorder %s21, 1
      %p77 = por %p75, %p76
      %p79 = scmp.ne.s32.totalorder %s64, %s78
      %p80 = scmp.eq.s32.totalorder %s21, 0
      %p81 = por %p79, %p80
      %s82 = ssub.s32 %s22, %s34
      %s83 = ssub.s32 %s23, %s30
      %s84 = sor.u32 %s82, %s83
      %p85 = scmp.eq.s32.totalorder %s84, 0
      %s87 = sadd.s32 %s86, 1
      %s88 = scalar_select %p85, %s86, %s87
      %p91 = pneg %p85
      %p92 = scmp.eq.s32.totalorder %s15, 1
      %p93 = por %p91, %p92
      %p94 = scmp.ne.s32.totalorder %s86, %s89
      %p95 = scmp.eq.s32.totalorder %s15, 0
      %p96 = por %p94, %p95
      %p97 = scmp.ne.s32.totalorder %s86, %s89
      %p98 = scmp.eq.s32.totalorder %s20, 1
      %p99 = por %p97, %p98
      %p100 = scmp.ne.s32.totalorder %s89, %s90
      %p101 = scmp.eq.s32.totalorder %s20, 0
      %p102 = por %p100, %p101
      %p103 = scmp.ne.s32.totalorder %s89, %s90
      %p104 = scmp.eq.s32.totalorder %s21, 1
      %p105 = por %p103, %p104
      %p107 = scmp.ne.s32.totalorder %s90, %s106
      %p108 = scmp.eq.s32.totalorder %s21, 0
      %p109 = por %p107, %p108
      %s110 = ssub.s32 %s22, %s34
      %s111 = ssub.s32 %s23, %s30
      %s112 = sor.u32 %s110, %s111
      %p113 = scmp.eq.s32.totalorder %s112, 0
      %s115 = sadd.s32 %s114, 1
      %s116 = scalar_select %p113, %s114, %s115
      %p119 = pneg %p113
      %p120 = scmp.eq.s32.totalorder %s15, 1
      %p121 = por %p119, %p120
      %p122 = scmp.ne.s32.totalorder %s114, %s117
      %p123 = scmp.eq.s32.totalorder %s15, 0
      %p124 = por %p122, %p123
      %p125 = scmp.ne.s32.totalorder %s114, %s117
      %p126 = scmp.eq.s32.totalorder %s20, 1
      %p127 = por %p125, %p126
      %p128 = scmp.ne.s32.totalorder %s117, %s118
      %p129 = scmp.eq.s32.totalorder %s20, 0
      %p130 = por %p128, %p129
      %p131 = scmp.ne.s32.totalorder %s117, %s118
      %p132 = scmp.eq.s32.totalorder %s21, 1
      %p133 = por %p131, %p132
      %p135 = scmp.ne.s32.totalorder %s118, %s134
      %p136 = scmp.eq.s32.totalorder %s21, 0
      %p137 = por %p135, %p136
      %p138 = scmp.le.s32.totalorder 1, %s15
      %p139 = scmp.lt.s32.totalorder %s15, 3
      %p140 = pnand %p138, %p139
      %p141 = pneg %p140
      // Predicated region
      $region9: #{tpu_custom_call.1} parent=5 // pred_check
        _
      $region10: #{tpu_custom_call.1} parent=5 // pred_check_branch
        %143 = sbr.rel (%p140) target = $region12
      $region11: #{tpu_custom_call.1} parent=5 // pred_region
        %s144 = ssub.s32 %s15, 1
        // Predicated region
        $region13: #{tpu_custom_call.1} parent=11 // pred_check
          %p145 = pneg %p53
        $region14: #{tpu_custom_call.1} parent=11 // pred_check_branch
          %147 = sbr.rel (%p145) target = $region16
        $region15: #{tpu_custom_call.1} parent=11 // pred_region
          %s148 = smul.u32 2, %s25
          %p149 = scmp.lt.s32.totalorder %s148, 1
          %s150 = scalar_select %p149, %s148, 1
          %s151 = smul.addr %s150, 2
          %s152 = scalar_lea.vmem %s0, %s151
          %s153 = smul.u32 2, %s25
        $region16: #{tpu_custom_call.1} parent=11 // pred_fallthru
          _
        // Predicated region
        $region17: #{tpu_custom_call.1} parent=11 // pred_check
          %p154 = pneg %p74
        $region18: #{tpu_custom_call.1} parent=11 // pred_check_branch
          %156 = sbr.rel (%p154) target = $region20
        $region19: #{tpu_custom_call.1} parent=11 // pred_region
          _
        $region20: #{tpu_custom_call.1} parent=11 // pred_fallthru
          _
      $region12: #{tpu_custom_call.1} parent=5 // pred_fallthru
        _
      %p157 = scmp.lt.s32.totalorder %s15, 2
      // Predicated region
      $region21: #{tpu_custom_call.1} parent=5 // pred_check
        %p158 = pneg %p157
      $region22: #{tpu_custom_call.1} parent=5 // pred_check_branch
        %160 = sbr.rel (%p158) target = $region24
      $region23: #{tpu_custom_call.1} parent=5 // pred_region
        // Predicated region
        $region25: #{tpu_custom_call.1} parent=23 // pred_check
          %p161 = pneg %p96
        $region26: #{tpu_custom_call.1} parent=23 // pred_check_branch
          %163 = sbr.rel (%p161) target = $region28
        $region27: #{tpu_custom_call.1} parent=23 // pred_region
          %s164 = sand.u32 %s86, 1
          %s165 = scalar_lea.sflag [#allocation3], %s164
          %s166 = sand.u32 %s86, 1
          %s167 = smul.addr %s166, 48
          %s168 = scalar_lea.vmem [#allocation2], %s167
          %s169 = smul.u32 2, %s23
          %s171 = ssub.s32 768, 768
          %172 = vsyncadd %s165, %s171
          %s173 = smul.addr %s22, 6
          %s174 = sadd.s32 %s169, %s173
          %s175 = smul.addr %s174, 128
          %s176 = scalar_lea.hbm %s2, %s175
          %s177 = sshll.u32 %s168, 4
          %s178 = int_to_ptr.vmem [resolvable:$true] %s177
          %183 = dma.hbm_to_vmem [thread:$0]  %s176, 768, %s178, %s165, 256, 256, 16
        $region28: #{tpu_custom_call.1} parent=23 // pred_fallthru
          _
      $region24: #{tpu_custom_call.1} parent=5 // pred_fallthru
        _
      %p184 = scmp.le.s32.totalorder 1, %s15
      %p185 = scmp.lt.s32.totalorder %s15, 3
      %p186 = pnand %p184, %p185
      %p187 = pneg %p186
      // Predicated region
      $region29: #{tpu_custom_call.1} parent=5 // pred_check
        _
      $region30: #{tpu_custom_call.1} parent=5 // pred_check_branch
        %189 = sbr.rel (%p186) target = $region32
      $region31: #{tpu_custom_call.1} parent=5 // pred_region
        %s190 = ssub.s32 %s15, 1
        %s191 = sand.u32 %s89, 1
        %s192 = scalar_lea.sflag [#allocation3], %s191
        %s193 = sand.u32 %s89, 1
        %s194 = smul.addr %s193, 48
        %s195 = scalar_lea.vmem [#allocation2], %s194
        // Predicated region
        $region33: #{tpu_custom_call.1} parent=31 // pred_check
          %p196 = pneg %p102
        $region34: #{tpu_custom_call.1} parent=31 // pred_check_branch
          %198 = sbr.rel (%p196) target = $region36
        $region35: #{tpu_custom_call.1} parent=31 // pred_region
          %199 = dma.done %s192, 768
        $region36: #{tpu_custom_call.1} parent=31 // pred_fallthru
          _
        %s200 = smul.u32 2, %s25
        %p201 = scmp.lt.s32.totalorder %s200, 1
        %s202 = scalar_select %p201, %s200, 1
        %s203 = smul.addr %s202, 2
        %s204 = scalar_lea.vmem %s0, %s203
        %p205 = pneg %p53
        %p206 = pneg %p50
        %p207 = pneg %p74
        %p208 = pneg %p71
        %s209 = sand.u32 %s89, 1
        %s210 = scalar_lea.sflag [#allocation3], %s209
        %s211 = sand.u32 %s89, 1
        %s212 = smul.addr %s211, 48
        %s213 = scalar_lea.vmem [#allocation2], %s212
        %p214 = pneg %p102
        %p215 = pneg %p99
        %p216 = pneg %p130
        %p217 = pneg %p127
        %s218 = sand.u32 %s117, 1
        %s219 = scalar_lea.sflag [#allocation4], %s218
        %s220 = sand.u32 %s117, 1
        %s221 = smul.addr %s220, 48
        %s222 = scalar_lea.vmem [#allocation5], %s221
        %s223 = smul.u32 2, %s25
        %p224 = scmp.lt.s32.totalorder %s223, 1
        %s225 = scalar_select %p224, %s223, 1
        %s226 = smul.addr %s225, 2
        %s227 = scalar_lea.vmem %s0, %s226
        %s228 = smul.u32 2, %s25
        %s229 = smul.u32 2, %s25
        %s230 = smul.u32 2, %s25
        %v231 = vld [vmem:[%s195] sm:$0xff]
        %v232 = vld [vmem:[%s195 + $0x8] sm:$0xff]
        %v233 = vld [vmem:[%s195 + $0x10] sm:$0xff]
        %v234 = vld [vmem:[%s195 + $0x18] sm:$0xff]
        %v235 = vld [vmem:[%s195 + $0x20] sm:$0xff]
        %v236 = vld [vmem:[%s195 + $0x28] sm:$0xff]
        %v237 = vxor.u32 %v231, 2147483648
        %v238 = vxor.u32 %v232, 2147483648
        %v239 = vxor.u32 %v233, 2147483648
        %v240 = vxor.u32 %v234, 2147483648
        %v241 = vxor.u32 %v235, 2147483648
        %v242 = vxor.u32 %v236, 2147483648
        %v243 = vmul.f32 %v237, 1.442695
        %v244 = vpow.pop %v243
        %v245 = vmul.f32 %v238, 1.442695
        %v246 = vpow.pop %v245
        %v247 = vmul.f32 %v239, 1.442695
        %v248 = vpow.pop %v247
        %v249 = vmul.f32 %v240, 1.442695
        %v250 = vpow.pop %v249
        %v251 = vmul.f32 %v241, 1.442695
        %v252 = vpow.pop %v251
        %v253 = vmul.f32 %v242, 1.442695
        %v254 = vpow.pop %v253
        %v255 = vadd.f32 %v244, 1.0
        %v256 = vadd.f32 %v246, 1.0
        %v257 = vadd.f32 %v248, 1.0
        %v258 = vadd.f32 %v250, 1.0
        %v259 = vadd.f32 %v252, 1.0
        %v260 = vadd.f32 %v254, 1.0
        %v261 = vrcp.pop %v255
        %v262 = vmul.f32 1.0, %v261
        %v263 = vrcp.pop %v256
        %v264 = vmul.f32 1.0, %v263
        %v265 = vrcp.pop %v257
        %v266 = vmul.f32 1.0, %v265
        %v267 = vrcp.pop %v258
        %v268 = vmul.f32 1.0, %v267
        %v269 = vrcp.pop %v259
        %v270 = vmul.f32 1.0, %v269
        %v271 = vrcp.pop %v260
        %v272 = vmul.f32 1.0, %v271
        %vm273 = vcmask 1043456
        %v274 = vsel %vm273, %v231, %v262
        %v275 = vsel %vm273, %v232, %v264
        %v276 = vsel %vm273, %v233, %v266
        %v277 = vsel %vm273, %v234, %v268
        %v278 = vsel %vm273, %v235, %v270
        %v279 = vsel %vm273, %v236, %v272
        %280 = vst [vmem:[%s222] sm:$0xff] %v274
        %281 = vst [vmem:[%s222 + $0x8] sm:$0xff] %v275
        %282 = vst [vmem:[%s222 + $0x10] sm:$0xff] %v276
        %283 = vst [vmem:[%s222 + $0x18] sm:$0xff] %v277
        %284 = vst [vmem:[%s222 + $0x20] sm:$0xff] %v278
        %285 = vst [vmem:[%s222 + $0x28] sm:$0xff] %v279
        %s286 = sand.u32 %s117, 1
        %s287 = scalar_lea.sflag [#allocation4], %s286
        %s288 = sand.u32 %s117, 1
        %s289 = smul.addr %s288, 48
        %s290 = scalar_lea.vmem [#allocation5], %s289
        // Predicated region
        $region37: #{tpu_custom_call.1} parent=31 // pred_check
          %p291 = pneg %p127
        $region38: #{tpu_custom_call.1} parent=31 // pred_check_branch
          %293 = sbr.rel (%p291) target = $region40
        $region39: #{tpu_custom_call.1} parent=31 // pred_region
          %s294 = smul.u32 2, %s25
          %s296 = ssub.s32 768, 768
          %297 = vsyncadd %s287, %s296
          %s298 = smul.addr %s24, 6
          %s299 = sadd.s32 %s294, %s298
          %s300 = smul.addr %s299, 128
          %s301 = scalar_lea.hbm %s3, %s300
          %s302 = sshll.u32 %s290, 4
          %s303 = int_to_ptr.vmem [resolvable:$true] %s302
          %308 = dma.vmem_to_hbm [thread:$0]  %s303, 768, %s301, %s287, 256, 256, 16
        $region40: #{tpu_custom_call.1} parent=31 // pred_fallthru
          _
      $region32: #{tpu_custom_call.1} parent=5 // pred_fallthru
        _
      %p309 = scmp.le.s32.totalorder 2, %s15
      // Predicated region
      $region41: #{tpu_custom_call.1} parent=5 // pred_check
        %p310 = pneg %p309
      $region42: #{tpu_custom_call.1} parent=5 // pred_check_branch
        %312 = sbr.rel (%p310) target = $region44
      $region43: #{tpu_custom_call.1} parent=5 // pred_region
        %s313 = ssub.s32 %s15, 2
        // Predicated region
        $region45: #{tpu_custom_call.1} parent=43 // pred_check
          %p314 = pneg %p133
        $region46: #{tpu_custom_call.1} parent=43 // pred_check_branch
          %316 = sbr.rel (%p314) target = $region48
        $region47: #{tpu_custom_call.1} parent=43 // pred_region
          %s317 = sand.u32 %s118, 1
          %s318 = scalar_lea.sflag [#allocation4], %s317
          %s319 = sand.u32 %s118, 1
          %s320 = smul.addr %s319, 48
          %s321 = scalar_lea.vmem [#allocation5], %s320
          %322 = dma.done %s318, 768
        $region48: #{tpu_custom_call.1} parent=43 // pred_fallthru
          _
      $region44: #{tpu_custom_call.1} parent=5 // pred_fallthru
        _
    $region6: #{tpu_custom_call.1} parent=1 // loop_footer
      %s19 = sadd.s32 1, %s15
    $region7: #{tpu_custom_call.1} parent=1 // loop_footer_branch
      %14 = sbr.rel target = $region3
    $region8: #{tpu_custom_call.1} parent=1 // loop_exit
      _
    %323 = vsyncpa [#allocation3], 1
    %s324 = scalar_lea.sflag [#allocation3], 1
    %325 = vsyncpa %s324, 1
    %326 = vsyncpa [#allocation4], 1
    %s327 = scalar_lea.sflag [#allocation4], 1
    %328 = vsyncpa %s327, 1

</llo_original>
